<compile_context>
chip_gen: v7x
topology: tpu7x:2x2x1
jax: 0.10.0
libtpu: 0.0.40
codegen_flags: <defaults>
</compile_context>

<pallas_src>
import functools

import jax
import jax.numpy as jnp
from jax.experimental import pallas as pl
from jax.experimental.pallas import tpu as pltpu


# ---------------------------------------------------------------------------
# Kernels
# ---------------------------------------------------------------------------
def _cross_kernel_rows(x_ref, w_ref, b_ref, out_ref, *, num_layers):
    """Natural layout: x block is (bb, D); D maps to lanes, batch to sublanes."""
    x0 = x_ref[...].astype(jnp.float32)                   # (bb, D) original input
    x = x0
    for l in range(num_layers):                           # static unroll (L is small)
        w = w_ref[l:l + 1, :].astype(jnp.float32)         # (1, D) static slice
        b = b_ref[l:l + 1, :].astype(jnp.float32)         # (1, D)
        x1 = jnp.sum(x * w, axis=-1, keepdims=True)       # (bb, 1)  == x . w_l
        x = x0 * x1 + x + b                                # cross + residual + bias
    out_ref[...] = x.astype(out_ref.dtype)


def _cross_kernel_cols(xt_ref, wt_ref, bt_ref, out_ref, *, num_layers):
    """Transposed layout for D < 128: x block is (D, bb); batch maps to lanes."""
    x0 = xt_ref[...].astype(jnp.float32)                  # (D, bb)
    x = x0
    for l in range(num_layers):
        w = wt_ref[:, l:l + 1].astype(jnp.float32)         # (D, 1)
        b = bt_ref[:, l:l + 1].astype(jnp.float32)         # (D, 1)
        x1 = jnp.sum(x * w, axis=0, keepdims=True)         # (1, bb) sublane reduce (XLU)
        x = x0 * x1 + x + b
    out_ref[...] = x.astype(out_ref.dtype)


# ---------------------------------------------------------------------------
# Tiling helpers
# ---------------------------------------------------------------------------
_TARGET_BLOCK_BYTES = 4 << 20      # ~4 MiB activation block (near HBM roofline)


def _vmem_limit_bytes():
    """Generation-aware VMEM limit (above scoped defaults, under physical cap)."""
    try:
        cap = int(pltpu.get_tpu_info().vmem_capacity_bytes)
    except Exception:
        cap = 64 << 20                                     # conservative (v7x)
    return max(32 << 20, min(int(cap * 3 // 4), 96 << 20))


def _choose_rows(B, D, itemsize):
    """Rows per block for the (B, D) layout (sublane-aligned, >=2 blocks on big B)."""
    rows = max(256, _TARGET_BLOCK_BYTES // max(1, D * itemsize))
    rows = min(int(rows), 8192)
    if B >= 512:                                           # v7x megacore: >= 2 blocks
        rows = min(rows, -(-B // 2))
    rows = max((rows // 8) * 8, 8)
    if rows >= B:
        rows = B                                           # single full block
    return rows


def _choose_lanes(B, D, itemsize):
    """Batch-lanes per block for the transposed (D, B) layout (128-aligned)."""
    lanes = max(512, _TARGET_BLOCK_BYTES // max(1, D * itemsize))
    lanes = min(int(lanes), 16384)
    if B >= 512:
        lanes = min(lanes, -(-B // 2))
    lanes = max((lanes // 128) * 128, 128)
    if lanes >= B:
        lanes = B
    return lanes


# ---------------------------------------------------------------------------
# Wrapper
# ---------------------------------------------------------------------------
def cross_network(x, weight, bias):
    """x: (B, D); weight, bias: (num_layers, D). Returns (B, D) in x.dtype."""
    B, D = x.shape
    L = weight.shape[0]
    out_dtype = x.dtype
    itemsize = jnp.dtype(out_dtype).itemsize

    cost = pl.CostEstimate(
        flops=4 * L * B * D,
        transcendentals=0,
        bytes_accessed=2 * B * D * itemsize + 2 * L * D * jnp.dtype(weight.dtype).itemsize,
    )
    cparams = pltpu.CompilerParams(
        dimension_semantics=("parallel",),
        vmem_limit_bytes=_vmem_limit_bytes(),
    )

    if D >= 128:
        # Natural (B, D) layout: D on lanes. (D % 128 != 0 is left unpadded: the
        # tail masked store is cheaper than an extra HBM pad/slice pass.)
        bb = _choose_rows(B, D, itemsize)
        grid = (pl.cdiv(B, bb),)
        return pl.pallas_call(
            functools.partial(_cross_kernel_rows, num_layers=L),
            out_shape=jax.ShapeDtypeStruct((B, D), out_dtype),
            grid=grid,
            in_specs=[
                pl.BlockSpec((bb, D), lambda i: (i, 0)),        # batch-blocked input
                pl.BlockSpec((L, D), lambda i: (0, 0)),         # shared stacked weights
                pl.BlockSpec((L, D), lambda i: (0, 0)),         # shared stacked biases
            ],
            out_specs=pl.BlockSpec((bb, D), lambda i: (i, 0)),
            compiler_params=cparams,
            cost_estimate=cost,
        )(x, weight, bias)

    # D < 128: lane-dense transposed layout (batch -> lanes, D -> sublanes).
    xt = x.T                                                   # (D, B) layout plumbing
    wt = weight.T                                              # (D, L) tiny
    bt = bias.T                                                # (D, L) tiny
    bb = _choose_lanes(B, D, itemsize)
    grid = (pl.cdiv(B, bb),)
    out_t = pl.pallas_call(
        functools.partial(_cross_kernel_cols, num_layers=L),
        out_shape=jax.ShapeDtypeStruct((D, B), out_dtype),
        grid=grid,
        in_specs=[
            pl.BlockSpec((D, bb), lambda i: (0, i)),            # batch-blocked (lanes)
            pl.BlockSpec((D, L), lambda i: (0, 0)),
            pl.BlockSpec((D, L), lambda i: (0, 0)),
        ],
        out_specs=pl.BlockSpec((D, bb), lambda i: (0, i)),
        compiler_params=cparams,
        cost_estimate=cost,
    )(xt, wt, bt)
    return out_t.T


# ---------------------------------------------------------------------------
# Pure-JAX reference (mirrors the PyTorch forward exactly)
# ---------------------------------------------------------------------------
def cross_network_ref(x, weight, bias):
    x0 = x.astype(jnp.float32)
    out = x0
    for l in range(weight.shape[0]):
        x1 = out @ weight[l].astype(jnp.float32)               # (B,)
        out = x0 * x1[:, None] + out + bias[l][None, :].astype(jnp.float32)
    return out.astype(x.dtype)


# ---------------------------------------------------------------------------
if __name__ == "__main__":
    key = jax.random.PRNGKey(0)

    # --- demo shapes from the module (small D -> transposed lane-dense path) ---
    B, embed_dim, num_layers = 8, 32, 3
    k_x, k_w, k_x2, k_w2 = jax.random.split(key, 4)
    x = jax.random.normal(k_x, (B, embed_dim), dtype=jnp.float32)
    weight = jax.random.normal(k_w, (num_layers, embed_dim), dtype=jnp.float32)
    bias = jnp.zeros((num_layers, embed_dim), dtype=jnp.float32)

    out = jax.block_until_ready(cross_network(x, weight, bias))
    ref = cross_network_ref(x, weight, bias)
    assert out.shape == (B, embed_dim) and out.dtype == x.dtype
    assert bool(jnp.all(jnp.isfinite(out)))
    assert bool(jnp.allclose(out, ref, rtol=1e-5, atol=1e-5))

    # --- second check: D >= 128 row path, >=2 grid blocks, ragged last block ---
    B2, D2, L2 = 520, 128, 2
    x2 = jax.random.normal(k_x2, (B2, D2), dtype=jnp.float32)
    w2 = jax.random.normal(k_w2, (L2, D2), dtype=jnp.float32) * 0.1
    b2 = jnp.zeros((L2, D2), dtype=jnp.float32)
    out2 = jax.block_until_ready(cross_network(x2, w2, b2))
    ref2 = cross_network_ref(x2, w2, b2)
    assert out2.shape == (B2, D2)
    assert bool(jnp.all(jnp.isfinite(out2)))
    assert bool(jnp.allclose(out2, ref2, rtol=1e-4, atol=1e-4))

    print("KERNEL_OK")
</pallas_src>

<mosaic_0001>
module attributes {stable_mosaic.version = 11 : i64} {
  func.func @_cross_kernel_cols(%arg0: i32, %arg1: memref<32x8xf32, #tpu.memory_space<vmem>>, %arg2: memref<32x3xf32, #tpu.memory_space<vmem>>, %arg3: memref<32x3xf32, #tpu.memory_space<vmem>>, %arg4: memref<32x8xf32, #tpu.memory_space<vmem>>) attributes {dimension_semantics = [#tpu.dimension_semantics<parallel>], iteration_bounds = array<i64: 1>, scalar_prefetch = 0 : i64, scratch_operands = 0 : i64, tpu.core_type = #tpu.core_type<tc>, window_params = [{transform_indices = @transform_0, window_bounds = array<i64: 32, 8>}, {pipeline_mode = #tpu.pipeline_mode<synchronous>, transform_indices = @transform_1, window_bounds = array<i64: 32, 3>}, {pipeline_mode = #tpu.pipeline_mode<synchronous>, transform_indices = @transform_2, window_bounds = array<i64: 32, 3>}, {transform_indices = @transform_3, window_bounds = array<i64: 32, 8>}]} {
    %c0 = arith.constant 0 : index
    %c0_0 = arith.constant 0 : index
    %0 = vector.load %arg1[%c0, %c0_0] : memref<32x8xf32, #tpu.memory_space<vmem>>, vector<32x8xf32>
    %c0_1 = arith.constant 0 : index
    %c0_2 = arith.constant 0 : index
    %1 = vector.load %arg2[%c0_1, %c0_2] : memref<32x3xf32, #tpu.memory_space<vmem>>, vector<32x1xf32>
    %c0_3 = arith.constant 0 : index
    %c0_4 = arith.constant 0 : index
    %2 = vector.load %arg3[%c0_3, %c0_4] : memref<32x3xf32, #tpu.memory_space<vmem>>, vector<32x1xf32>
    %3 = vector.broadcast %1 : vector<32x1xf32> to vector<32x8xf32>
    %4 = arith.mulf %0, %3 : vector<32x8xf32>
    %cst = arith.constant dense<0.000000e+00> : vector<8xf32>
    %5 = vector.multi_reduction <add>, %4, %cst [0] : vector<32x8xf32> to vector<8xf32>
    %6 = vector.shape_cast %5 : vector<8xf32> to vector<1x8xf32>
    %7 = vector.broadcast %6 : vector<1x8xf32> to vector<32x8xf32>
    %8 = arith.mulf %0, %7 : vector<32x8xf32>
    %9 = arith.addf %8, %0 : vector<32x8xf32>
    %10 = vector.broadcast %2 : vector<32x1xf32> to vector<32x8xf32>
    %11 = arith.addf %9, %10 : vector<32x8xf32>
    %c0_5 = arith.constant 0 : index
    %c1 = arith.constant 1 : index
    %12 = vector.load %arg2[%c0_5, %c1] : memref<32x3xf32, #tpu.memory_space<vmem>>, vector<32x1xf32>
    %c0_6 = arith.constant 0 : index
    %c1_7 = arith.constant 1 : index
    %13 = vector.load %arg3[%c0_6, %c1_7] : memref<32x3xf32, #tpu.memory_space<vmem>>, vector<32x1xf32>
    %14 = vector.broadcast %12 : vector<32x1xf32> to vector<32x8xf32>
    %15 = arith.mulf %11, %14 : vector<32x8xf32>
    %cst_8 = arith.constant dense<0.000000e+00> : vector<8xf32>
    %16 = vector.multi_reduction <add>, %15, %cst_8 [0] : vector<32x8xf32> to vector<8xf32>
    %17 = vector.shape_cast %16 : vector<8xf32> to vector<1x8xf32>
    %18 = vector.broadcast %17 : vector<1x8xf32> to vector<32x8xf32>
    %19 = arith.mulf %0, %18 : vector<32x8xf32>
    %20 = arith.addf %19, %11 : vector<32x8xf32>
    %21 = vector.broadcast %13 : vector<32x1xf32> to vector<32x8xf32>
    %22 = arith.addf %20, %21 : vector<32x8xf32>
    %c0_9 = arith.constant 0 : index
    %c2 = arith.constant 2 : index
    %23 = vector.load %arg2[%c0_9, %c2] : memref<32x3xf32, #tpu.memory_space<vmem>>, vector<32x1xf32>
    %c0_10 = arith.constant 0 : index
    %c2_11 = arith.constant 2 : index
    %24 = vector.load %arg3[%c0_10, %c2_11] : memref<32x3xf32, #tpu.memory_space<vmem>>, vector<32x1xf32>
    %25 = vector.broadcast %23 : vector<32x1xf32> to vector<32x8xf32>
    %26 = arith.mulf %22, %25 : vector<32x8xf32>
    %cst_12 = arith.constant dense<0.000000e+00> : vector<8xf32>
    %27 = vector.multi_reduction <add>, %26, %cst_12 [0] : vector<32x8xf32> to vector<8xf32>
    %28 = vector.shape_cast %27 : vector<8xf32> to vector<1x8xf32>
    %29 = vector.broadcast %28 : vector<1x8xf32> to vector<32x8xf32>
    %30 = arith.mulf %0, %29 : vector<32x8xf32>
    %31 = arith.addf %30, %22 : vector<32x8xf32>
    %32 = vector.broadcast %24 : vector<32x1xf32> to vector<32x8xf32>
    %33 = arith.addf %31, %32 : vector<32x8xf32>
    %c0_13 = arith.constant 0 : index
    %c0_14 = arith.constant 0 : index
    %34 = vector.load %arg4[%c0_13, %c0_14] : memref<32x8xf32, #tpu.memory_space<vmem>>, vector<32x8xf32>
    tpu.vector_store %arg4[%c0_13, %c0_14], %33 {strides = array<i32>} : memref<32x8xf32, #tpu.memory_space<vmem>>, vector<32x8xf32>,
    return
  }
  func.func @transform_0(%arg0: i32) -> (i32, i32) {
    %c0_i32 = arith.constant 0 : i32
    %c0_i32_0 = arith.constant 0 : i32
    return %c0_i32, %arg0 : i32, i32
  }
  func.func @transform_1(%arg0: i32) -> (i32, i32) {
    %c0_i32 = arith.constant 0 : i32
    %c0_i32_0 = arith.constant 0 : i32
    %c0_i32_1 = arith.constant 0 : i32
    return %c0_i32, %c0_i32_0 : i32, i32
  }
  func.func @transform_2(%arg0: i32) -> (i32, i32) {
    %c0_i32 = arith.constant 0 : i32
    %c0_i32_0 = arith.constant 0 : i32
    %c0_i32_1 = arith.constant 0 : i32
    return %c0_i32, %c0_i32_0 : i32, i32
  }
  func.func @transform_3(%arg0: i32) -> (i32, i32) {
    %c0_i32 = arith.constant 0 : i32
    %c0_i32_0 = arith.constant 0 : i32
    return %c0_i32, %arg0 : i32, i32
  }
}

</mosaic_0001>

<llo_original>
// kernel: tpu_custom_call.1
$region0: #{tpu_custom_call.1}
  #allocation0 [shape = 'u32[]', space=smem, size = 0x4, offset = 0x4, fixed_abs, tag = 'smem constant byte address 0x4 - core index']
  #allocation1 [shape = 'u32[144,128]{1,0:T(1,128)}', space=vmem, size = 0x12000, scoped, tag = 'internal scratch']
  %s0 = inlined_call_operand.vmem [shape: f32[32,8], index: 0, kind: input, shape index: {}]
  %s1 = inlined_call_operand.vmem [shape: f32[32,3], index: 1, kind: input, shape index: {}]
  %s2 = inlined_call_operand.vmem [shape: f32[32,3], index: 2, kind: input, shape index: {}]
  %s3 = inlined_call_operand.vmem [shape: f32[32,8], index: 3, kind: output, shape index: {}]
  %s4 = sld [smem:[#allocation0]]
  $region22: #{tpu_custom_call.1} parent=0
    _
  %s6 = ssub.s32 1, %s4
  %s7 = scalar_select 0, %s6, %s4
  // Predicated region
  $region2: #{tpu_custom_call.1} parent=0 // pred_check
    _
  $region3: #{tpu_custom_call.1} parent=0 // pred_check_branch
    %9 = sbr.rel (0) target = $region5
  $region4: #{tpu_custom_call.1} parent=0 // pred_region
    _
  $region5: #{tpu_custom_call.1} parent=0 // pred_fallthru
    _
  // Predicated region
  $region6: #{tpu_custom_call.1} parent=0 // pred_check
    _
  $region7: #{tpu_custom_call.1} parent=0 // pred_check_branch
    %11 = sbr.rel (0) target = $region9
  $region8: #{tpu_custom_call.1} parent=0 // pred_region
    _
  $region9: #{tpu_custom_call.1} parent=0 // pred_fallthru
    _
  // Predicated region
  $region10: #{tpu_custom_call.1} parent=0 // pred_check
    _
  $region11: #{tpu_custom_call.1} parent=0 // pred_check_branch
    %13 = sbr.rel (0) target = $region13
  $region12: #{tpu_custom_call.1} parent=0 // pred_region
    _
  $region13: #{tpu_custom_call.1} parent=0 // pred_fallthru
    _
  %v14 = vld [vmem:[%s0] sm:$0xff]
  %v15 = vld [vmem:[%s0 + $0x8] sm:$0xff]
  %v16 = vld [vmem:[%s0 + $0x10] sm:$0xff]
  %v17 = vld [vmem:[%s0 + $0x18] sm:$0xff]
  %v18 = vld [vmem:[%s1] sm:$0xff]
  %v19 = vld [vmem:[%s1 + $0x8] sm:$0xff]
  %v20 = vld [vmem:[%s1 + $0x10] sm:$0xff]
  %v21 = vld [vmem:[%s1 + $0x18] sm:$0xff]
  %v22 = vld [vmem:[%s2] sm:$0xff]
  %v23 = vld [vmem:[%s2 + $0x8] sm:$0xff]
  %v24 = vld [vmem:[%s2 + $0x10] sm:$0xff]
  %v25 = vld [vmem:[%s2 + $0x18] sm:$0xff]
  %27 = vset.pattern.permute.xlu0 0
  %28 = vperm.xlu0 %27, %v18
  %v29 = vpop.permute.xlu0 %28
  %32 = vset.pattern.permute.xlu0 0
  %33 = vperm.xlu0 %32, %v19
  %v34 = vpop.permute.xlu0 %33
  %37 = vset.pattern.permute.xlu0 0
  %38 = vperm.xlu0 %37, %v20
  %v39 = vpop.permute.xlu0 %38
  %42 = vset.pattern.permute.xlu0 0
  %43 = vperm.xlu0 %42, %v21
  %v44 = vpop.permute.xlu0 %43
  %v46 = vmul.f32 %v14, %v29
  %v47 = vmul.f32 %v15, %v34
  %v48 = vmul.f32 %v16, %v39
  %v49 = vmul.f32 %v17, %v44
  %vm50 = vcmask 64512
  %v51 = vsel %vm50, %v46, 0.0
  %v52 = vsel %vm50, %v47, 0.0
  %v53 = vadd.f32 %v51, %v52
  %v54 = vsel %vm50, %v48, 0.0
  %v55 = vadd.f32 %v53, %v54
  %v56 = vsel %vm50, %v49, 0.0
  %v57 = vadd.f32 %v55, %v56
  %v58 = vrot.slane %v57, 4
  %v59 = vadd.f32 %v57, %v58
  %v60 = vrot.slane %v59, 2
  %v61 = vadd.f32 %v59, %v60
  %v62 = vrot.slane %v61, 1
  %v63 = vadd.f32 %v61, %v62
  %v64 = vmul.f32 %v14, %v63
  %v65 = vmul.f32 %v15, %v63
  %v66 = vmul.f32 %v16, %v63
  %v67 = vmul.f32 %v17, %v63
  %v68 = vadd.f32 %v64, %v14
  %v69 = vadd.f32 %v65, %v15
  %v70 = vadd.f32 %v66, %v16
  %v71 = vadd.f32 %v67, %v17
  %73 = vset.pattern.permute.xlu0 0
  %74 = vperm.xlu0 %73, %v22
  %v75 = vpop.permute.xlu0 %74
  %78 = vset.pattern.permute.xlu0 0
  %79 = vperm.xlu0 %78, %v23
  %v80 = vpop.permute.xlu0 %79
  %83 = vset.pattern.permute.xlu0 0
  %84 = vperm.xlu0 %83, %v24
  %v85 = vpop.permute.xlu0 %84
  %88 = vset.pattern.permute.xlu0 0
  %89 = vperm.xlu0 %88, %v25
  %v90 = vpop.permute.xlu0 %89
  %v92 = vadd.f32 %v68, %v75
  %v93 = vadd.f32 %v69, %v80
  %v94 = vadd.f32 %v70, %v85
  %v95 = vadd.f32 %v71, %v90
  %96 = vset.pattern.permute.xlu0 1
  %97 = vperm.xlu0 %96, %v18
  %v98 = vpop.permute.xlu0 %97
  %100 = vset.pattern.permute.xlu0 1
  %101 = vperm.xlu0 %100, %v19
  %v102 = vpop.permute.xlu0 %101
  %104 = vset.pattern.permute.xlu0 1
  %105 = vperm.xlu0 %104, %v20
  %v106 = vpop.permute.xlu0 %105
  %108 = vset.pattern.permute.xlu0 1
  %109 = vperm.xlu0 %108, %v21
  %v110 = vpop.permute.xlu0 %109
  %v112 = vmul.f32 %v92, %v98
  %v113 = vmul.f32 %v93, %v102
  %v114 = vmul.f32 %v94, %v106
  %v115 = vmul.f32 %v95, %v110
  %v116 = vsel %vm50, %v112, 0.0
  %v117 = vsel %vm50, %v113, 0.0
  %v118 = vadd.f32 %v116, %v117
  %v119 = vsel %vm50, %v114, 0.0
  %v120 = vadd.f32 %v118, %v119
  %v121 = vsel %vm50, %v115, 0.0
  %v122 = vadd.f32 %v120, %v121
  %v123 = vrot.slane %v122, 4
  %v124 = vadd.f32 %v122, %v123
  %v125 = vrot.slane %v124, 2
  %v126 = vadd.f32 %v124, %v125
  %v127 = vrot.slane %v126, 1
  %v128 = vadd.f32 %v126, %v127
  %v129 = vmul.f32 %v14, %v128
  %v130 = vmul.f32 %v15, %v128
  %v131 = vmul.f32 %v16, %v128
  %v132 = vmul.f32 %v17, %v128
  %v133 = vadd.f32 %v129, %v92
  %v134 = vadd.f32 %v130, %v93
  %v135 = vadd.f32 %v131, %v94
  %v136 = vadd.f32 %v132, %v95
  %137 = vset.pattern.permute.xlu0 1
  %138 = vperm.xlu0 %137, %v22
  %v139 = vpop.permute.xlu0 %138
  %141 = vset.pattern.permute.xlu0 1
  %142 = vperm.xlu0 %141, %v23
  %v143 = vpop.permute.xlu0 %142
  %145 = vset.pattern.permute.xlu0 1
  %146 = vperm.xlu0 %145, %v24
  %v147 = vpop.permute.xlu0 %146
  %149 = vset.pattern.permute.xlu0 1
  %150 = vperm.xlu0 %149, %v25
  %v151 = vpop.permute.xlu0 %150
  %v153 = vadd.f32 %v133, %v139
  %v154 = vadd.f32 %v134, %v143
  %v155 = vadd.f32 %v135, %v147
  %v156 = vadd.f32 %v136, %v151
  %157 = vset.pattern.permute.xlu0 2
  %158 = vperm.xlu0 %157, %v18
  %v159 = vpop.permute.xlu0 %158
  %161 = vset.pattern.permute.xlu0 2
  %162 = vperm.xlu0 %161, %v19
  %v163 = vpop.permute.xlu0 %162
  %165 = vset.pattern.permute.xlu0 2
  %166 = vperm.xlu0 %165, %v20
  %v167 = vpop.permute.xlu0 %166
  %169 = vset.pattern.permute.xlu0 2
  %170 = vperm.xlu0 %169, %v21
  %v171 = vpop.permute.xlu0 %170
  %v173 = vmul.f32 %v153, %v159
  %v174 = vmul.f32 %v154, %v163
  %v175 = vmul.f32 %v155, %v167
  %v176 = vmul.f32 %v156, %v171
  %v177 = vsel %vm50, %v173, 0.0
  %v178 = vsel %vm50, %v174, 0.0
  %v179 = vadd.f32 %v177, %v178
  %v180 = vsel %vm50, %v175, 0.0
  %v181 = vadd.f32 %v179, %v180
  %v182 = vsel %vm50, %v176, 0.0
  %v183 = vadd.f32 %v181, %v182
  %v184 = vrot.slane %v183, 4
  %v185 = vadd.f32 %v183, %v184
  %v186 = vrot.slane %v185, 2
  %v187 = vadd.f32 %v185, %v186
  %v188 = vrot.slane %v187, 1
  %v189 = vadd.f32 %v187, %v188
  %v190 = vmul.f32 %v14, %v189
  %v191 = vmul.f32 %v15, %v189
  %v192 = vmul.f32 %v16, %v189
  %v193 = vmul.f32 %v17, %v189
  %v194 = vadd.f32 %v190, %v153
  %v195 = vadd.f32 %v191, %v154
  %v196 = vadd.f32 %v192, %v155
  %v197 = vadd.f32 %v193, %v156
  %198 = vset.pattern.permute.xlu0 2
  %199 = vperm.xlu0 %198, %v22
  %v200 = vpop.permute.xlu0 %199
  %202 = vset.pattern.permute.xlu0 2
  %203 = vperm.xlu0 %202, %v23
  %v204 = vpop.permute.xlu0 %203
  %206 = vset.pattern.permute.xlu0 2
  %207 = vperm.xlu0 %206, %v24
  %v208 = vpop.permute.xlu0 %207
  %210 = vset.pattern.permute.xlu0 2
  %211 = vperm.xlu0 %210, %v25
  %v212 = vpop.permute.xlu0 %211
  %v214 = vadd.f32 %v194, %v200
  %v215 = vadd.f32 %v195, %v204
  %v216 = vadd.f32 %v196, %v208
  %v217 = vadd.f32 %v197, %v212
  %218 = vst.msk [vmem:[%s3] sm:$0xff] %vm50, %v214
  %219 = vst.msk [vmem:[%s3 + $0x8] sm:$0xff] %vm50, %v215
  %220 = vst.msk [vmem:[%s3 + $0x10] sm:$0xff] %vm50, %v216
  %221 = vst.msk [vmem:[%s3 + $0x18] sm:$0xff] %vm50, %v217
  // Predicated region
  $region14: #{tpu_custom_call.1} parent=0 // pred_check
    _
  $region15: #{tpu_custom_call.1} parent=0 // pred_check_branch
    %223 = sbr.rel (0) target = $region17
  $region16: #{tpu_custom_call.1} parent=0 // pred_region
    _
  $region17: #{tpu_custom_call.1} parent=0 // pred_fallthru
    _
  // Predicated region
  $region18: #{tpu_custom_call.1} parent=0 // pred_check
    _
  $region19: #{tpu_custom_call.1} parent=0 // pred_check_branch
    %225 = sbr.rel (0) target = $region21
  $region20: #{tpu_custom_call.1} parent=0 // pred_region
    _
  $region21: #{tpu_custom_call.1} parent=0 // pred_fallthru
    _

</llo_original>
